<compile_context>
chip_gen: v7x
topology: tpu7x:2x2x1
jax: 0.10.0
libtpu: 0.0.40
codegen_flags: <defaults>
</compile_context>

<pallas_src>
import functools

import jax
import jax.numpy as jnp
from jax.experimental import pallas as pl
from jax.experimental.pallas import tpu as pltpu


def _pick_tile(dim, pref, multiple=1):
    """Largest tile <= pref that divides `dim` and is a multiple of `multiple`;
    falls back to the full dim (which is always a legal block extent)."""
    pref = max(multiple, min(pref, dim))
    pref = (pref // multiple) * multiple
    t = pref
    while t >= multiple:
        if dim % t == 0:
            return t
        t -= multiple
    return dim


# --------------------------------------------------------------------------
# Kernel 1: tiled global average pool (optionally fused with folded BN affine)
# --------------------------------------------------------------------------
def _pool_kernel(x_ref, *rest, inv_hw: float, fuse_affine: bool):
    if fuse_affine:
        scale_ref, bias_ref, out_ref, acc_ref = rest
    else:
        out_ref, acc_ref = rest

    hw_i = pl.program_id(1)

    @pl.when(hw_i == 0)
    def _():
        acc_ref[...] = jnp.zeros_like(acc_ref)

    # Accumulate the spatial sum in f32; the input stays in its native dtype
    # (bf16 in production) all the way through the HBM->VMEM DMA.
    acc_ref[...] += jnp.sum(x_ref[...].astype(jnp.float32), axis=1)

    @pl.when(hw_i == pl.num_programs(1) - 1)
    def _():
        pooled = acc_ref[...] * inv_hw                    # global average pool
        if fuse_affine:
            # Eval path: BN with running stats pre-folded to scale / bias.
            out_ref[...] = pooled * scale_ref[...] + bias_ref[...]
        else:
            out_ref[...] = pooled


# --------------------------------------------------------------------------
# Kernel 2 (training only): batch-stat BN + linear classifier on the MXU
# --------------------------------------------------------------------------
def _train_head_kernel(gf_ref, gamma_ref, beta_ref, wt_ref,
                       logits_ref, bn_ref, bn_bf16, *, eps: float):
    @pl.when(pl.program_id(0) == 0)
    def _():
        gf = gf_ref[...]                                   # (N, C) f32
        # PyTorch BatchNorm train mode: biased batch statistics over N.
        mean = jnp.mean(gf, axis=0, keepdims=True)
        var = jnp.mean(jnp.square(gf - mean), axis=0, keepdims=True)
        bn = (gf - mean) * jax.lax.rsqrt(var + eps) * gamma_ref[...] + beta_ref[...]
        bn_ref[...] = bn
        bn_bf16[...] = bn.astype(jnp.bfloat16)

    # bf16 x bf16 -> f32 MXU matmul, tiled over the (padded) class dim.
    logits_ref[...] = jnp.dot(bn_bf16[...], wt_ref[...],
                              preferred_element_type=jnp.float32)


# --------------------------------------------------------------------------
# Wrapper
# --------------------------------------------------------------------------
def bnneck_head_forward(features_nchw, gamma, beta, running_mean, running_var,
                        cls_weight, *, eps=1e-5, training=True,
                        neck_feat='before', targets=None,
                        block_n=8, block_hw=None, block_k=512):
    """features_nchw: (N, C, H, W) in its native dtype.
    cls_weight: (num_classes, C) -- PyTorch nn.Linear layout."""
    n, c, h, w = features_nchw.shape
    hw = h * w
    k = cls_weight.shape[0]

    # Lane-dense layout: (N, HW, C) so C sits on the 128-lane axis.
    x = jnp.transpose(features_nchw.reshape(n, c, hw), (0, 2, 1))

    tn = _pick_tile(n, block_n, 8)            # tn % 8 == 0, or tn == N (full)
    if block_hw is None:
        # Target ~4 MiB per input block (BlockSpec double-buffers -> ~8 MiB),
        # safe under v7x's 64 MiB physical / 32 MiB scoped VMEM.
        tgt = (4 * 1024 * 1024) // max(1, tn * c * x.dtype.itemsize)
        block_hw = max(8, (tgt // 8) * 8)
    thw = _pick_tile(hw, block_hw, 8)
    grid = (n // tn, hw // thw)

    pool_params = pltpu.CompilerParams(
        dimension_semantics=("parallel", "arbitrary"),
        vmem_limit_bytes=32 * 1024 * 1024)

    if not training:
        # ------------------ eval: fused pool + folded BN -------------------
        scale1 = gamma.astype(jnp.float32) * jax.lax.rsqrt(
            running_var.astype(jnp.float32) + eps)
        bias1 = beta.astype(jnp.float32) - running_mean.astype(jnp.float32) * scale1
        scale2 = scale1.reshape(1, c)
        bias2 = bias1.reshape(1, c)

        kern = functools.partial(_pool_kernel, inv_hw=1.0 / hw, fuse_affine=True)
        bn_feat = pl.pallas_call(
            kern,
            out_shape=jax.ShapeDtypeStruct((n, c), jnp.float32),
            grid=grid,
            in_specs=[
                pl.BlockSpec((tn, thw, c), lambda i, j: (i, j, 0)),
                pl.BlockSpec((1, c), lambda i, j: (0, 0)),
                pl.BlockSpec((1, c), lambda i, j: (0, 0)),
            ],
            out_specs=pl.BlockSpec((tn, c), lambda i, j: (i, 0)),
            scratch_shapes=[pltpu.VMEM((tn, c), jnp.float32)],
            compiler_params=pool_params,
        )(x, scale2, bias2)
        return bn_feat

    # ------------------ training: pool, then BN + classifier ---------------
    kern = functools.partial(_pool_kernel, inv_hw=1.0 / hw, fuse_affine=False)
    global_feat = pl.pallas_call(
        kern,
        out_shape=jax.ShapeDtypeStruct((n, c), jnp.float32),
        grid=grid,
        in_specs=[pl.BlockSpec((tn, thw, c), lambda i, j: (i, j, 0))],
        out_specs=pl.BlockSpec((tn, c), lambda i, j: (i, 0)),
        scratch_shapes=[pltpu.VMEM((tn, c), jnp.float32)],
        compiler_params=pool_params,
    )(x)

    # Classifier weight: bf16 for the MXU, classes padded to a multiple of 128
    # (lane-dense logits -> unmasked stores); padded columns are zero.
    kp = ((k + 127) // 128) * 128
    wt = jnp.zeros((c, kp), jnp.bfloat16).at[:, :k].set(
        cls_weight.T.astype(jnp.bfloat16))
    tk = _pick_tile(kp, block_k, 128)

    head = functools.partial(_train_head_kernel, eps=eps)
    logits_p, bn_feat = pl.pallas_call(
        head,
        out_shape=(jax.ShapeDtypeStruct((n, kp), jnp.float32),
                   jax.ShapeDtypeStruct((n, c), jnp.float32)),
        grid=(kp // tk,),
        in_specs=[
            pl.BlockSpec((n, c), lambda kk: (0, 0)),
            pl.BlockSpec((1, c), lambda kk: (0, 0)),
            pl.BlockSpec((1, c), lambda kk: (0, 0)),
            pl.BlockSpec((c, tk), lambda kk: (0, kk)),
        ],
        out_specs=(
            pl.BlockSpec((n, tk), lambda kk: (0, kk)),
            pl.BlockSpec((n, c), lambda kk: (0, 0)),
        ),
        scratch_shapes=[pltpu.VMEM((n, c), jnp.bfloat16)],
        compiler_params=pltpu.CompilerParams(
            dimension_semantics=("arbitrary",),
            vmem_limit_bytes=32 * 1024 * 1024),
    )(global_feat,
      gamma.reshape(1, c).astype(jnp.float32),
      beta.reshape(1, c).astype(jnp.float32),
      wt)

    logits = logits_p[:, :k]

    if neck_feat == 'before':
        feat = global_feat
    elif neck_feat == 'after':
        feat = bn_feat
    else:
        raise KeyError("MODEL.HEADS.NECK_FEAT must be 'before' or 'after'")
    return logits, feat, targets


# --------------------------------------------------------------------------
# Pure-JAX reference (matmul done in bf16 like the kernel's MXU path)
# --------------------------------------------------------------------------
def _reference(features_nchw, gamma, beta, rmean, rvar, cls_weight,
               eps=1e-5, training=True):
    gf = jnp.mean(features_nchw.astype(jnp.float32), axis=(2, 3))
    if training:
        mean = jnp.mean(gf, axis=0, keepdims=True)
        var = jnp.mean((gf - mean) ** 2, axis=0, keepdims=True)
    else:
        mean, var = rmean[None, :], rvar[None, :]
    bn = (gf - mean) / jnp.sqrt(var + eps) * gamma[None, :] + beta[None, :]
    logits = jnp.dot(bn.astype(jnp.bfloat16), cls_weight.T.astype(jnp.bfloat16),
                     preferred_element_type=jnp.float32)
    return logits, gf, bn


if __name__ == "__main__":
    key = jax.random.PRNGKey(0)
    k_feat, k_cls, k_rm, k_rv = jax.random.split(key, 4)

    # Small shapes consistent with the module: N=2, in_feat(C)=32, H=W=8, classes=16
    N, C, H, W = 2, 32, 8, 8
    NUM_CLASSES = 16

    features = jax.random.normal(k_feat, (N, C, H, W), dtype=jnp.float32)

    # bnneck params: weights_init_kaiming -> BN weight=1, bias=0 (bias frozen).
    gamma = jnp.ones((C,), jnp.float32)
    beta = jnp.zeros((C,), jnp.float32)
    running_mean = 0.1 * jax.random.normal(k_rm, (C,), dtype=jnp.float32)
    running_var = jnp.abs(1.0 + 0.1 * jax.random.normal(k_rv, (C,), dtype=jnp.float32))

    # classifier: weights_init_classifier -> normal(std=0.001), no bias.
    cls_weight = 0.001 * jax.random.normal(k_cls, (NUM_CLASSES, C), dtype=jnp.float32)

    targets = jnp.arange(N, dtype=jnp.int32)

    # Training path ('before'): (logits, feat, targets); block_hw=16 -> 4 pipelined HW chunks.
    logits, feat, _ = bnneck_head_forward(
        features, gamma, beta, running_mean, running_var, cls_weight,
        training=True, neck_feat='before', targets=targets, block_hw=16)
    jax.block_until_ready((logits, feat))

    # Training path ('after') to also exercise the batch-stat BN output.
    _, feat_after, _ = bnneck_head_forward(
        features, gamma, beta, running_mean, running_var, cls_weight,
        training=True, neck_feat='after', targets=targets, block_hw=16)
    jax.block_until_ready(feat_after)

    # Eval path: bn_feat only (running stats, no classifier work).
    bn_eval = bnneck_head_forward(
        features, gamma, beta, running_mean, running_var, cls_weight,
        training=False, block_hw=16)
    jax.block_until_ready(bn_eval)

    # Check against the pure-JAX reference.
    ref_logits, ref_gf, ref_bn_train = _reference(
        features, gamma, beta, running_mean, running_var, cls_weight, training=True)
    _, _, ref_bn_eval = _reference(
        features, gamma, beta, running_mean, running_var, cls_weight, training=False)

    assert jnp.allclose(feat, ref_gf, atol=1e-4, rtol=1e-4), "global_feat mismatch"
    assert jnp.allclose(feat_after, ref_bn_train, atol=1e-4, rtol=1e-4), "train bn_feat mismatch"
    assert jnp.allclose(bn_eval, ref_bn_eval, atol=1e-4, rtol=1e-4), "eval bn_feat mismatch"
    assert jnp.allclose(logits, ref_logits, atol=1e-4, rtol=1e-2), "logits mismatch"

    print("KERNEL_OK")
</pallas_src>

<mosaic_0001>
module attributes {stable_mosaic.version = 11 : i64} {
  func.func @_pool_kernel(%arg0: i32, %arg1: i32, %arg2: memref<2x16x32xf32, #tpu.memory_space<vmem>>, %arg3: memref<2x32xf32, #tpu.memory_space<vmem>>, %arg4: memref<2x32xf32, #tpu.memory_space<vmem>>) attributes {dimension_semantics = [#tpu.dimension_semantics<parallel>, #tpu.dimension_semantics<arbitrary>], iteration_bounds = array<i64: 1, 4>, scalar_prefetch = 0 : i64, scratch_operands = 1 : i64, tpu.core_type = #tpu.core_type<tc>, window_params = [{transform_indices = @transform_0, window_bounds = array<i64: 2, 16, 32>}, {transform_indices = @transform_1, window_bounds = array<i64: 2, 32>}]} {
    %c0_i32 = arith.constant 0 : i32
    %0 = arith.cmpi eq, %arg1, %c0_i32 : i32
    %1 = arith.extui %0 : i1 to i32
    %c0_i32_0 = arith.constant 0 : i32
    %2 = arith.cmpi ne, %1, %c0_i32_0 : i32
    scf.if %2 {
      %cst_8 = arith.constant 0.000000e+00 : f32
      %11 = vector.broadcast %cst_8 : f32 to vector<2x32xf32>
      %c0_9 = arith.constant 0 : index
      %c0_10 = arith.constant 0 : index
      %12 = vector.load %arg4[%c0_9, %c0_10] : memref<2x32xf32, #tpu.memory_space<vmem>>, vector<2x32xf32>
      tpu.vector_store %arg4[%c0_9, %c0_10], %11 {strides = array<i32>} : memref<2x32xf32, #tpu.memory_space<vmem>>, vector<2x32xf32>,
    } else {
    }
    %c0 = arith.constant 0 : index
    %c0_1 = arith.constant 0 : index
    %3 = vector.load %arg4[%c0, %c0_1] : memref<2x32xf32, #tpu.memory_space<vmem>>, vector<2x32xf32>
    %c0_2 = arith.constant 0 : index
    %c0_3 = arith.constant 0 : index
    %c0_4 = arith.constant 0 : index
    %4 = vector.load %arg2[%c0_2, %c0_3, %c0_4] : memref<2x16x32xf32, #tpu.memory_space<vmem>>, vector<2x16x32xf32>
    %cst = arith.constant dense<0.000000e+00> : vector<2x32xf32>
    %5 = vector.multi_reduction <add>, %4, %cst [1] : vector<2x16x32xf32> to vector<2x32xf32>
    %6 = arith.addf %3, %5 : vector<2x32xf32>
    %c0_5 = arith.constant 0 : index
    %c0_6 = arith.constant 0 : index
    %7 = vector.load %arg4[%c0_5, %c0_6] : memref<2x32xf32, #tpu.memory_space<vmem>>, vector<2x32xf32>
    tpu.vector_store %arg4[%c0_5, %c0_6], %6 {strides = array<i32>} : memref<2x32xf32, #tpu.memory_space<vmem>>, vector<2x32xf32>,
    %c3_i32 = arith.constant 3 : i32
    %8 = arith.cmpi eq, %arg1, %c3_i32 : i32
    %9 = arith.extui %8 : i1 to i32
    %c0_i32_7 = arith.constant 0 : i32
    %10 = arith.cmpi ne, %9, %c0_i32_7 : i32
    scf.if %10 {
      %c0_8 = arith.constant 0 : index
      %c0_9 = arith.constant 0 : index
      %11 = vector.load %arg4[%c0_8, %c0_9] : memref<2x32xf32, #tpu.memory_space<vmem>>, vector<2x32xf32>
      %cst_10 = arith.constant 1.562500e-02 : f32
      %12 = vector.broadcast %cst_10 : f32 to vector<2x32xf32>
      %13 = arith.mulf %11, %12 : vector<2x32xf32>
      %c0_11 = arith.constant 0 : index
      %c0_12 = arith.constant 0 : index
      %14 = vector.load %arg3[%c0_11, %c0_12] : memref<2x32xf32, #tpu.memory_space<vmem>>, vector<2x32xf32>
      tpu.vector_store %arg3[%c0_11, %c0_12], %13 {strides = array<i32>} : memref<2x32xf32, #tpu.memory_space<vmem>>, vector<2x32xf32>,
    } else {
    }
    return
  }
  func.func @transform_0(%arg0: i32, %arg1: i32) -> (i32, i32, i32) {
    %c0_i32 = arith.constant 0 : i32
    %c0_i32_0 = arith.constant 0 : i32
    return %arg0, %arg1, %c0_i32 : i32, i32, i32
  }
  func.func @transform_1(%arg0: i32, %arg1: i32) -> (i32, i32) {
    %c0_i32 = arith.constant 0 : i32
    %c0_i32_0 = arith.constant 0 : i32
    return %arg0, %c0_i32 : i32, i32
  }
}

</mosaic_0001>

<llo_original>
// kernel: tpu_custom_call.1
$region0: #{tpu_custom_call.1}
  #allocation0 [shape = 'u32[]', space=smem, size = 0x4, offset = 0x4, fixed_abs, tag = 'smem constant byte address 0x4 - core index']
  #allocation1 [shape = 'u32[144,128]{1,0:T(1,128)}', space=vmem, size = 0x12000, scoped, tag = 'internal scratch']
  #allocation2 [shape = 'f32[2,32]{1,0:T(2,128)}', space=vmem, size = 0x400, scoped, tag = 'scratch operand']
  %s0 = inlined_call_operand.vmem [shape: f32[2,64,32], index: 0, kind: input, shape index: {}]
  %s1 = inlined_call_operand.hbm [shape: f32[2,32], index: 1, kind: output, shape index: {}]
  %s2 = sld [smem:[#allocation0]]
  $region83: #{tpu_custom_call.1} parent=0
    _
  %s4 = ssub.s32 1, %s2
  %s5 = scalar_select 0, %s4, %s2
  $region1: #{tpu_custom_call.1} parent=0
    #allocation3 [shape = 'u8[32768]{0}', space=vmem, size = 0x8000, scoped, tag = 'input window, operand 0']
    #allocation4 [shape = 'u8[1024]{0}', space=vmem, size = 0x400, scoped, tag = 'output window, operand 0, single buffered']
    #allocation5 [shape = 's32[2]{0}', space=sflag, size = 0x8, scoped, tag = 'scoped memory for tpu_custom_call.1']
    %6 = vsyncpa [#allocation5], 0
    loop: start=0, step=1, limit=6
    $region2: #{tpu_custom_call.1} parent=1 // loop_pre_header
      _
    $region3: #{tpu_custom_call.1} parent=1 // loop_header
      %s8 = sphi 0, %s12
      %p9 = scmp.ge.s32.totalorder %s8, 6
      %s15 = sphi 0, %s27
      %s16 = sphi 0, %s23
      %s17 = sphi 0, %s15
      %s18 = sphi 0, %s16
      %s19 = sphi 0, %s17
      %s20 = sphi 0, %s18
      %s32 = sphi 0, %s34
      %s35 = sphi 0, %s32
      %s36 = sphi 0, %s35
      %s52 = sphi 0, %s36
      %s58 = sphi 0, %s60
      %s61 = sphi 0, %s58
      %s62 = sphi 0, %s61
      %s78 = sphi 0, %s62
    $region4: #{tpu_custom_call.1} parent=1 // loop_header_branch
      %11 = sbr.rel (%p9) target = $region8
    $region5: #{tpu_custom_call.1} parent=1 // loop_body
      %s13 = ssub.s32 %s8, 1
      %s14 = ssub.s32 %s8, 2
      %s21 = sadd.s32 1, %s16
      %p22 = scmp.ge.s32.totalorder %s21, 4
      %s23 = scalar_select %p22, 0, %s21
      %s24 = sadd.s32 1, %s15
      %s25 = scalar_select %p22, %s24, %s15
      %p26 = scmp.ge.s32.totalorder %s25, 1
      %s27 = scalar_select %p26, 0, %s25
      %s28 = ssub.s32 %s15, %s27
      %s29 = ssub.s32 %s16, %s23
      %s30 = sor.u32 %s28, %s29
      %p31 = scmp.eq.s32.totalorder %s30, 0
      %s33 = sadd.s32 %s32, 1
      %s34 = scalar_select %p31, %s32, %s33
      %p37 = pneg %p31
      %p38 = scmp.eq.s32.totalorder %s8, 3
      %p39 = por %p37, %p38
      %p40 = scmp.ne.s32.totalorder %s32, %s35
      %p41 = scmp.eq.s32.totalorder %s8, 0
      %p42 = por %p40, %p41
      %p43 = scmp.ne.s32.totalorder %s32, %s35
      %p44 = scmp.eq.s32.totalorder %s13, 3
      %p45 = por %p43, %p44
      %p46 = scmp.ne.s32.totalorder %s35, %s36
      %p47 = scmp.eq.s32.totalorder %s13, 0
      %p48 = por %p46, %p47
      %p49 = scmp.ne.s32.totalorder %s35, %s36
      %p50 = scmp.eq.s32.totalorder %s14, 3
      %p51 = por %p49, %p50
      %p53 = scmp.ne.s32.totalorder %s36, %s52
      %p54 = scmp.eq.s32.totalorder %s14, 0
      %p55 = por %p53, %p54
      %s56 = ssub.s32 %s15, %s27
      %p57 = scmp.eq.s32.totalorder %s56, 0
      %s59 = sadd.s32 %s58, 1
      %s60 = scalar_select %p57, %s58, %s59
      %p63 = pneg %p57
      %p64 = scmp.eq.s32.totalorder %s8, 3
      %p65 = por %p63, %p64
      %p66 = scmp.ne.s32.totalorder %s58, %s61
      %p67 = scmp.eq.s32.totalorder %s8, 0
      %p68 = por %p66, %p67
      %p69 = scmp.ne.s32.totalorder %s58, %s61
      %p70 = scmp.eq.s32.totalorder %s13, 3
      %p71 = por %p69, %p70
      %p72 = scmp.ne.s32.totalorder %s61, %s62
      %p73 = scmp.eq.s32.totalorder %s13, 0
      %p74 = por %p72, %p73
      %p75 = scmp.ne.s32.totalorder %s61, %s62
      %p76 = scmp.eq.s32.totalorder %s14, 3
      %p77 = por %p75, %p76
      %p79 = scmp.ne.s32.totalorder %s62, %s78
      %p80 = scmp.eq.s32.totalorder %s14, 0
      %p81 = por %p79, %p80
      %p82 = scmp.le.s32.totalorder 1, %s8
      %p83 = scmp.lt.s32.totalorder %s8, 5
      %p84 = pnand %p82, %p83
      %p85 = pneg %p84
      // Predicated region
      $region9: #{tpu_custom_call.1} parent=5 // pred_check
        _
      $region10: #{tpu_custom_call.1} parent=5 // pred_check_branch
        %87 = sbr.rel (%p84) target = $region12
      $region11: #{tpu_custom_call.1} parent=5 // pred_region
        %s88 = ssub.s32 %s8, 1
      $region12: #{tpu_custom_call.1} parent=5 // pred_fallthru
        _
      %p89 = scmp.lt.s32.totalorder %s8, 4
      // Predicated region
      $region13: #{tpu_custom_call.1} parent=5 // pred_check
        %p90 = pneg %p89
      $region14: #{tpu_custom_call.1} parent=5 // pred_check_branch
        %92 = sbr.rel (%p90) target = $region16
      $region15: #{tpu_custom_call.1} parent=5 // pred_region
        // Predicated region
        $region17: #{tpu_custom_call.1} parent=15 // pred_check
          %p93 = pneg %p42
        $region18: #{tpu_custom_call.1} parent=15 // pred_check_branch
          %95 = sbr.rel (%p93) target = $region20
        $region19: #{tpu_custom_call.1} parent=15 // pred_region
          %s96 = sand.u32 %s32, 1
          %s97 = sand.u32 %s32, 1
          %s98 = smul.addr %s97, 32
          %s99 = scalar_lea.vmem [#allocation3], %s98
          %s100 = smul.u32 2, %s15
          %s101 = smul.u32 2, %s16
          %s102 = smul.addr %s100, 8
          %s103 = sadd.s32 %s101, %s102
          %s104 = smul.addr %s103, 8
          %s105 = scalar_lea.vmem %s0, %s104
          // Predicated region
          $region21: #{tpu_custom_call.1} parent=19 // pred_check
            _
          $region22: #{tpu_custom_call.1} parent=19 // pred_check_branch
            %107 = sbr.rel (0) target = $region24
          $region23: #{tpu_custom_call.1} parent=19 // pred_region
            // Predicated region
            $region25: #{tpu_custom_call.1} parent=23 // pred_check
              _
            $region26: #{tpu_custom_call.1} parent=23 // pred_check_branch
              %109 = sbr.rel (0) target = $region28
            $region27: #{tpu_custom_call.1} parent=23 // pred_region
              // Predicated region
              $region40: #{tpu_custom_call.1} parent=27 // pred_check
                _
              $region41: #{tpu_custom_call.1} parent=27 // pred_check_branch
                %130 = sbr.rel (0) target = $region43
              $region42: #{tpu_custom_call.1} parent=27 // pred_region
                loop: start=0, step=1, limit=1
                $region44: #{tpu_custom_call.1} parent=42 // loop_pre_header
                  _
                $region45: #{tpu_custom_call.1} parent=42 // loop_header
                  %s132 = sphi 0, %s136
                  %p133 = scmp.ge.s32.totalorder %s132, 1
                  %s137 = sphi %s105, %s105
                  %s138 = sphi %s99, %s99
                $region46: #{tpu_custom_call.1} parent=42 // loop_header_branch
                  %135 = sbr.rel (%p133) target = $region50
                $region47: #{tpu_custom_call.1} parent=42 // loop_body
                  %v139 = vld [vmem:[%s137] sm:$0xff]
                  %140 = vst [vmem:[%s138] sm:$0xff] %v139
                  %v141 = vld [vmem:[%s137 + $0x8] sm:$0xff]
                  %142 = vst [vmem:[%s138 + $0x8] sm:$0xff] %v141
                  %v143 = vld [vmem:[%s137 + $0x40] sm:$0xff]
                  %144 = vst [vmem:[%s138 + $0x10] sm:$0xff] %v143
                  %v145 = vld [vmem:[%s137 + $0x48] sm:$0xff]
                  %146 = vst [vmem:[%s138 + $0x18] sm:$0xff] %v145
                $region48: #{tpu_custom_call.1} parent=42 // loop_footer
                  %s136 = sadd.s32 1, %s132
                $region49: #{tpu_custom_call.1} parent=42 // loop_footer_branch
                  %131 = sbr.rel target = $region45
                $region50: #{tpu_custom_call.1} parent=42 // loop_exit
                  _
              $region43: #{tpu_custom_call.1} parent=27 // pred_fallthru
                _
              // Predicated region
              $region51: #{tpu_custom_call.1} parent=27 // pred_check
                _
              $region52: #{tpu_custom_call.1} parent=27 // pred_check_branch
                %148 = sbr.rel target = $region54
              $region53: #{tpu_custom_call.1} parent=27 // pred_region
                _
              $region54: #{tpu_custom_call.1} parent=27 // pred_fallthru
                _
            $region28: #{tpu_custom_call.1} parent=23 // pred_fallthru
              _
            // Predicated region
            $region29: #{tpu_custom_call.1} parent=23 // pred_check
              _
            $region30: #{tpu_custom_call.1} parent=23 // pred_check_branch
              %111 = sbr.rel target = $region32
            $region31: #{tpu_custom_call.1} parent=23 // pred_region
              loop: start=0, step=1, limit=1
              $region33: #{tpu_custom_call.1} parent=31 // loop_pre_header
                _
              $region34: #{tpu_custom_call.1} parent=31 // loop_header
                %s114 = sphi 0, %s118
                %p115 = scmp.ge.s32.totalorder %s114, 1
                %s119 = sphi %s105, %s105
                %s120 = sphi %s99, %s99
              $region35: #{tpu_custom_call.1} parent=31 // loop_header_branch
                %117 = sbr.rel (%p115) target = $region39
              $region36: #{tpu_custom_call.1} parent=31 // loop_body
                %v121 = vld [vmem:[%s119] sm:$0xff]
                %122 = vst [vmem:[%s120] sm:$0xff] %v121
                %v123 = vld [vmem:[%s119 + $0x8] sm:$0xff]
                %124 = vst [vmem:[%s120 + $0x8] sm:$0xff] %v123
                %v125 = vld [vmem:[%s119 + $0x40] sm:$0xff]
                %126 = vst [vmem:[%s120 + $0x10] sm:$0xff] %v125
                %v127 = vld [vmem:[%s119 + $0x48] sm:$0xff]
                %128 = vst [vmem:[%s120 + $0x18] sm:$0xff] %v127
              $region37: #{tpu_custom_call.1} parent=31 // loop_footer
                %s118 = sadd.s32 1, %s114
              $region38: #{tpu_custom_call.1} parent=31 // loop_footer_branch
                %113 = sbr.rel target = $region34
              $region39: #{tpu_custom_call.1} parent=31 // loop_exit
                _
            $region32: #{tpu_custom_call.1} parent=23 // pred_fallthru
              _
          $region24: #{tpu_custom_call.1} parent=19 // pred_fallthru
            _
          %149 = vnop
        $region20: #{tpu_custom_call.1} parent=15 // pred_fallthru
          _
      $region16: #{tpu_custom_call.1} parent=5 // pred_fallthru
        _
      %p150 = scmp.le.s32.totalorder 1, %s8
      %p151 = scmp.lt.s32.totalorder %s8, 5
      %p152 = pnand %p150, %p151
      %p153 = pneg %p152
      // Predicated region
      $region55: #{tpu_custom_call.1} parent=5 // pred_check
        _
      $region56: #{tpu_custom_call.1} parent=5 // pred_check_branch
        %155 = sbr.rel (%p152) target = $region58
      $region57: #{tpu_custom_call.1} parent=5 // pred_region
        %s156 = ssub.s32 %s8, 1
        %s157 = sand.u32 %s35, 1
        %s158 = sand.u32 %s35, 1
        %s159 = smul.addr %s158, 32
        %s160 = scalar_lea.vmem [#allocation3], %s159
        // Predicated region
        $region59: #{tpu_custom_call.1} parent=57 // pred_check
          %p161 = pneg %p48
        $region60: #{tpu_custom_call.1} parent=57 // pred_check_branch
          %163 = sbr.rel (%p161) target = $region62
        $region61: #{tpu_custom_call.1} parent=57 // pred_region
          _
        $region62: #{tpu_custom_call.1} parent=57 // pred_fallthru
          _
        %s164 = sand.u32 %s35, 1
        %s165 = sand.u32 %s35, 1
        %s166 = smul.addr %s165, 32
        %s167 = scalar_lea.vmem [#allocation3], %s166
        %p168 = pneg %p48
        %p169 = pneg %p45
        %p170 = pneg %p74
        %p171 = pneg %p71
        %s172 = smul.u32 2, %s17
        %s173 = smul.u32 2, %s18
        %p174 = scmp.eq.s32.totalorder %s18, 0
        // Predicated region
        $region63: #{tpu_custom_call.1} parent=57 // pred_check
          %p175 = pneg %p174
        $region64: #{tpu_custom_call.1} parent=57 // pred_check_branch
          %177 = sbr.rel (%p175) target = $region66
        $region65: #{tpu_custom_call.1} parent=57 // pred_region
          %vm178 = vcmask 254976
          %179 = vst.msk [vmem:[#allocation2] sm:$0x3] %vm178, 0.0
        $region66: #{tpu_custom_call.1} parent=57 // pred_fallthru
          _
        %v180 = vld [vmem:[#allocation2] sm:$0x3]
        %v181 = vld [vmem:[%s160] sm:$0xff]
        %v182 = vld [vmem:[%s160 + $0x8] sm:$0xff]
        %v183 = vld [vmem:[%s160 + $0x10] sm:$0xff]
        %v184 = vld [vmem:[%s160 + $0x18] sm:$0xff]
        %vm185 = vcmask 261120
        %v186 = vsel %vm185, %v181, 0.0
        %v187 = vsel %vm185, %v182, 0.0
        %v188 = vadd.f32 %v186, %v187
        %v189 = vrot.slane %v188, 4
        %v190 = vadd.f32 %v188, %v189
        %v191 = vrot.slane %v190, 2
        %v192 = vadd.f32 %v190, %v191
        %v193 = vrot.slane %v192, 1
        %v194 = vadd.f32 %v192, %v193
        %v195 = vsel %vm185, %v183, 0.0
        %v196 = vsel %vm185, %v184, 0.0
        %v197 = vadd.f32 %v195, %v196
        %v198 = vrot.slane %v197, 4
        %v199 = vadd.f32 %v197, %v198
        %v200 = vrot.slane %v199, 2
        %v201 = vadd.f32 %v199, %v200
        %v202 = vrot.slane %v201, 1
        %v203 = vadd.f32 %v201, %v202
        %vm206 = vcmask 1041409
        %v207 = vsel %vm206, %v203, %v194
        %v209 = vadd.f32 %v180, %v207
        %vm210 = vcmask 254976
        %211 = vst.msk [vmem:[#allocation2] sm:$0x3] %vm210, %v209
        %p212 = scmp.eq.s32.totalorder %s18, 3
        // Predicated region
        $region67: #{tpu_custom_call.1} parent=57 // pred_check
          %p213 = pneg %p212
        $region68: #{tpu_custom_call.1} parent=57 // pred_check_branch
          %215 = sbr.rel (%p213) target = $region70
        $region69: #{tpu_custom_call.1} parent=57 // pred_region
          %v216 = vld [vmem:[#allocation2] sm:$0x3]
          %v217 = vmul.f32 %v216, 0.015625
          %218 = vst.msk [vmem:[#allocation4] sm:$0x3] %vm210, %v217
        $region70: #{tpu_custom_call.1} parent=57 // pred_fallthru
          _
        // Predicated region
        $region71: #{tpu_custom_call.1} parent=57 // pred_check
          %p219 = pneg %p71
        $region72: #{tpu_custom_call.1} parent=57 // pred_check_branch
          %221 = sbr.rel (%p219) target = $region74
        $region73: #{tpu_custom_call.1} parent=57 // pred_region
          %s223 = ssub.s32 32, 32
          %224 = vsyncadd [#allocation5], %s223
          %s225 = smul.addr %s17, 32
          %s226 = scalar_lea.hbm %s1, %s225
          %s228 = sshll.u32 [#allocation4], 4
          %s229 = int_to_ptr.vmem [resolvable:$true] %s228
          %231 = dma.vmem_to_hbm [thread:$0]  %s229, 32, %s226, [#allocation5]
        $region74: #{tpu_custom_call.1} parent=57 // pred_fallthru
          _
        // Predicated region
        $region75: #{tpu_custom_call.1} parent=57 // pred_check
          %p232 = pneg %p71
        $region76: #{tpu_custom_call.1} parent=57 // pred_check_branch
          %234 = sbr.rel (%p232) target = $region78
        $region77: #{tpu_custom_call.1} parent=57 // pred_region
          %235 = dma.done [#allocation5], 32
        $region78: #{tpu_custom_call.1} parent=57 // pred_fallthru
          _
      $region58: #{tpu_custom_call.1} parent=5 // pred_fallthru
        _
      %p236 = scmp.le.s32.totalorder 2, %s8
      // Predicated region
      $region79: #{tpu_custom_call.1} parent=5 // pred_check
        %p237 = pneg %p236
      $region80: #{tpu_custom_call.1} parent=5 // pred_check_branch
        %239 = sbr.rel (%p237) target = $region82
      $region81: #{tpu_custom_call.1} parent=5 // pred_region
        %s240 = ssub.s32 %s8, 2
      $region82: #{tpu_custom_call.1} parent=5 // pred_fallthru
        _
    $region6: #{tpu_custom_call.1} parent=1 // loop_footer
      %s12 = sadd.s32 1, %s8
    $region7: #{tpu_custom_call.1} parent=1 // loop_footer_branch
      %7 = sbr.rel target = $region3
    $region8: #{tpu_custom_call.1} parent=1 // loop_exit
      _
    %241 = vsyncpa [#allocation5], 1
    %s242 = scalar_lea.sflag [#allocation5], 1
    %243 = vsyncpa %s242, 1

</llo_original>
